<compile_context>
chip_gen: v6e
topology: v6e:2x2x1
jax: 0.10.0
libtpu: 0.0.40
codegen_flags: <defaults>
</compile_context>

<pallas_src>
import functools

import jax
import jax.numpy as jnp
from jax.experimental import pallas as pl
from jax.experimental.pallas import tpu as pltpu


# ----------------------------- helpers -------------------------------------


def _round_up(x: int, m: int) -> int:
    return ((x + m - 1) // m) * m


def _sublane_multiple(dtype) -> int:
    # sub-32-bit dtypes pack along sublanes: 8 rows (f32), 16 (bf16), 32 (int8/fp8)
    return {4: 8, 2: 16, 1: 32}.get(jnp.dtype(dtype).itemsize, 8)


def _pick_tile(target: int, total: int, align: int) -> int:
    """Largest multiple of `align` <= min(target, total) that divides `total`.

    `total` is assumed to be a multiple of `align`.
    """
    t = max(align, (min(target, total) // align) * align)
    while total % t:
        t -= align
    return t


def _pad2(a, rows: int, cols: int):
    pr, pc = rows - a.shape[0], cols - a.shape[1]
    if pr == 0 and pc == 0:
        return a
    return jnp.pad(a, ((0, pr), (0, pc)))


@functools.lru_cache(maxsize=None)
def _vmem_limit_bytes() -> int:
    # Generation-aware scoped-VMEM limit: ~75% of physical, capped at 100 MiB.
    # v7x (64 MiB) -> 48 MiB; v5e/v6e (128 MiB) -> 96 MiB.
    try:
        cap = pltpu.get_tpu_info().vmem_capacity_bytes
        return int(min(cap * 3 // 4, 100 << 20))
    except Exception:
        return 48 << 20


# ----------------------------- kernels -------------------------------------


def _linear_kernel_single(x_ref, w_ref, b_ref, o_ref):
    # Gridless fast path: whole problem resident in VMEM.
    acc = jax.lax.dot_general(
        x_ref[...],
        w_ref[...],
        dimension_numbers=(((1,), (1,)), ((), ())),  # x(B,K) . w(N,K)^T
        preferred_element_type=jnp.float32,
    )
    o_ref[...] = (acc + b_ref[...]).astype(o_ref.dtype)


def _linear_kernel_f32out(x_ref, w_ref, b_ref, o_ref):
    # f32 output: accumulate directly into the K-resident output block.
    k = pl.program_id(2)

    @pl.when(k == 0)
    def _init():
        o_ref[...] = jnp.broadcast_to(b_ref[...], o_ref.shape)

    o_ref[...] += jax.lax.dot_general(
        x_ref[...],
        w_ref[...],
        dimension_numbers=(((1,), (1,)), ((), ())),  # x(tm,tk) . w(tn,tk)^T
        preferred_element_type=jnp.float32,
    )


def _linear_kernel_acc(x_ref, w_ref, b_ref, o_ref, acc_ref):
    # Low-precision output: f32 VMEM accumulator, bias add + cast on last K step.
    k = pl.program_id(2)

    @pl.when(k == 0)
    def _init():
        acc_ref[...] = jnp.zeros_like(acc_ref)

    acc_ref[...] += jax.lax.dot_general(
        x_ref[...],
        w_ref[...],
        dimension_numbers=(((1,), (1,)), ((), ())),
        preferred_element_type=jnp.float32,
    )

    @pl.when(k == pl.num_programs(2) - 1)
    def _finalize():
        o_ref[...] = (acc_ref[...] + b_ref[...]).astype(o_ref.dtype)


# ----------------------------- wrapper -------------------------------------


@functools.partial(jax.jit, static_argnames=("tm", "tn", "tk"))
def linear_regression_forward(x, weight, bias, *, tm=512, tn=512, tk=512):
    """y = x @ weight.T + bias, matching torch.nn.Linear semantics."""
    B, K = x.shape
    N, K2 = weight.shape
    assert K == K2, "weight in_features must match x feature dim"

    # Common compute dtype (do not silently downcast the weight).
    dtype = jnp.promote_types(x.dtype, weight.dtype)
    x = x.astype(dtype)
    w = weight.astype(dtype)            # kept as (N, K): no transpose copy
    b2d = bias.reshape(1, N).astype(jnp.float32)

    sub = _sublane_multiple(dtype)
    itemsize = jnp.dtype(dtype).itemsize

    # Pad only to lane/sublane alignment; padded K/N are zero (correct) and
    # padded rows/cols are sliced off the output.
    Bp = _round_up(B, sub)
    Kp = _round_up(K, 128)
    Np = _round_up(N, 128)

    vmem_limit = _vmem_limit_bytes()

    # ---- small-problem fast path: one block, no grid, no pipeline overhead ----
    total_bytes = (Bp * Kp + Np * Kp + Bp * Np) * itemsize + Np * 4
    if total_bytes <= (4 << 20):
        out = pl.pallas_call(
            _linear_kernel_single,
            out_shape=jax.ShapeDtypeStruct((Bp, Np), dtype),
            in_specs=[pl.BlockSpec(memory_space=pltpu.MemorySpace.VMEM)] * 3,
            out_specs=pl.BlockSpec(memory_space=pltpu.MemorySpace.VMEM),
            compiler_params=pltpu.CompilerParams(vmem_limit_bytes=vmem_limit),
        )(_pad2(x, Bp, Kp), _pad2(w, Np, Kp), _pad2(b2d, 1, Np))
        return out[:B, :N]

    # ---- tiled (M, N, K) path ----
    # Cover the whole batch with one M block when it fits: weight is then
    # streamed from HBM exactly once.
    if Bp <= 1024:
        tm_eff = Bp
    else:
        tm_eff = max(sub, (min(tm, 512) // sub) * sub)
        Bp = _round_up(B, tm_eff)

    tn_eff = _pick_tile(tn, Np, 128)
    tk_eff = _pick_tile(tk, Kp, 128)

    grid_m = Bp // tm_eff
    grid_n = Np // tn_eff
    # Keep >= 2 parallel blocks for v7x's 2 TensorCores (harmless on v5e/v6e).
    if grid_m * grid_n == 1 and Np >= 256:
        tn_eff = _pick_tile(max(tn_eff // 2, 128), Np, 128)
        grid_n = Np // tn_eff
    grid_k = Kp // tk_eff
    grid = (grid_m, grid_n, grid_k)

    x_p = _pad2(x, Bp, Kp)
    w_p = _pad2(w, Np, Kp)
    b_p = _pad2(b2d, 1, Np)

    cost = pl.CostEstimate(
        flops=2 * B * N * K,
        transcendentals=0,
        bytes_accessed=(B * K + N * K + B * N) * itemsize + N * 4,
    )

    f32_out = dtype == jnp.float32
    kernel = _linear_kernel_f32out if f32_out else _linear_kernel_acc
    scratch = [] if f32_out else [pltpu.VMEM((tm_eff, tn_eff), jnp.float32)]

    out = pl.pallas_call(
        kernel,
        out_shape=jax.ShapeDtypeStruct((Bp, Np), dtype),
        grid_spec=pltpu.PrefetchScalarGridSpec(
            num_scalar_prefetch=0,
            grid=grid,
            in_specs=[
                pl.BlockSpec((tm_eff, tk_eff), lambda i, j, k: (i, k)),  # x (B, K)
                pl.BlockSpec((tn_eff, tk_eff), lambda i, j, k: (j, k)),  # w (N, K)
                pl.BlockSpec((1, tn_eff), lambda i, j, k: (0, j)),       # bias
            ],
            out_specs=pl.BlockSpec((tm_eff, tn_eff), lambda i, j, k: (i, j)),
            scratch_shapes=scratch,
        ),
        compiler_params=pltpu.CompilerParams(
            dimension_semantics=("parallel", "parallel", "arbitrary"),
            vmem_limit_bytes=vmem_limit,
        ),
        cost_estimate=cost,
    )(x_p, w_p, b_p)

    return out[:B, :N]


# ----------------------------- demo / check --------------------------------


if __name__ == "__main__":
    key = jax.random.PRNGKey(0)

    def make_case(k, batch, in_features, out_features):
        kx, kw, kb = jax.random.split(k, 3)
        xx = jax.random.normal(kx, (batch, in_features), dtype=jnp.float32)
        bound = 1.0 / (in_features ** 0.5)
        ww = jax.random.uniform(kw, (out_features, in_features), jnp.float32,
                                -bound, bound)
        bb = jax.random.uniform(kb, (out_features,), jnp.float32, -bound, bound)
        return xx, ww, bb

    k1, k2 = jax.random.split(key)

    # Small case consistent with nn.Linear(32, 16), batch 8 -> fast path.
    x, w, b = make_case(k1, 8, 32, 16)
    out = jax.block_until_ready(linear_regression_forward(x, w, b))
    ref = jnp.matmul(x, w.T, precision=jax.lax.Precision.HIGHEST) + b
    assert out.shape == ref.shape
    assert jnp.allclose(out, ref, atol=1e-4, rtol=1e-4), \
        float(jnp.max(jnp.abs(out - ref)))

    # Larger case exercises the tiled (M, N, K) path (incl. N padding + slicing).
    x2, w2, b2 = make_case(k2, 120, 1024, 1000)
    out2 = jax.block_until_ready(linear_regression_forward(x2, w2, b2))
    ref2 = jnp.matmul(x2, w2.T, precision=jax.lax.Precision.HIGHEST) + b2
    assert out2.shape == ref2.shape
    assert jnp.allclose(out2, ref2, atol=1e-3, rtol=1e-3), \
        float(jnp.max(jnp.abs(out2 - ref2)))

    print("KERNEL_OK")
</pallas_src>

<mosaic_0001>
module attributes {stable_mosaic.version = 11 : i64} {
  func.func @_linear_kernel_single(%arg0: memref<8x128xf32, #tpu.memory_space<vmem>>, %arg1: memref<128x128xf32, #tpu.memory_space<vmem>>, %arg2: memref<1x128xf32, #tpu.memory_space<vmem>>, %arg3: memref<8x128xf32, #tpu.memory_space<vmem>>) attributes {dimension_semantics = [], scalar_prefetch = 0 : i64, scratch_operands = 0 : i64, tpu.core_type = #tpu.core_type<tc>} {
    %c0 = arith.constant 0 : index
    %c0_0 = arith.constant 0 : index
    %0 = vector.load %arg0[%c0, %c0_0] : memref<8x128xf32, #tpu.memory_space<vmem>>, vector<8x128xf32>
    %c0_1 = arith.constant 0 : index
    %c0_2 = arith.constant 0 : index
    %1 = vector.load %arg1[%c0_1, %c0_2] : memref<128x128xf32, #tpu.memory_space<vmem>>, vector<128x128xf32>
    %cst = arith.constant dense<0.000000e+00> : vector<8x128xf32>
    %2 = tpu.matmul %0, %1, %cst {dimension_numbers = #tpu.dot_dimension_numbers<[1], [1], [0], [0], [0, 0, 1, 0], [], []>} : vector<8x128xf32>, vector<128x128xf32>, vector<8x128xf32> -> vector<8x128xf32>
    %c0_3 = arith.constant 0 : index
    %c0_4 = arith.constant 0 : index
    %3 = vector.load %arg2[%c0_3, %c0_4] : memref<1x128xf32, #tpu.memory_space<vmem>>, vector<1x128xf32>
    %4 = vector.broadcast %3 : vector<1x128xf32> to vector<8x128xf32>
    %5 = arith.addf %2, %4 : vector<8x128xf32>
    %c0_5 = arith.constant 0 : index
    %c0_6 = arith.constant 0 : index
    %6 = vector.load %arg3[%c0_5, %c0_6] : memref<8x128xf32, #tpu.memory_space<vmem>>, vector<8x128xf32>
    tpu.vector_store %arg3[%c0_5, %c0_6], %5 {strides = array<i32>} : memref<8x128xf32, #tpu.memory_space<vmem>>, vector<8x128xf32>,
    return
  }
}

</mosaic_0001>

<llo_original>
// kernel: linear_regression_forward.1
$region0: #{linear_regression_forward.1}
  #allocation0 [shape = 'u32[]', space=smem, size = 0x4, offset = 0x4, fixed_abs, tag = 'smem constant byte address 0x4 - core index']
  #allocation1 [shape = 'u32[144,128]{1,0:T(1,128)}', space=vmem, size = 0x12000, scoped, tag = 'internal scratch']
  %s0 = inlined_call_operand.vmem [shape: f32[8,128], index: 0, kind: input, shape index: {}]
  %s1 = inlined_call_operand.vmem [shape: f32[128,128], index: 1, kind: input, shape index: {}]
  %s2 = inlined_call_operand.vmem [shape: f32[1,128], index: 2, kind: input, shape index: {}]
  %s3 = inlined_call_operand.hbm [shape: f32[8,128], index: 3, kind: output, shape index: {}]
  %s4 = sld [smem:[#allocation0]]
  $region22: #{linear_regression_forward.1} parent=0
    _
  %s6 = ssub.s32 1, %s4
  %s7 = scalar_select 0, %s6, %s4
  $region1: #{linear_regression_forward.1} parent=0
    #allocation2 [shape = 'u8[4096]{0}', space=vmem, size = 0x1000, scoped, tag = 'output window, operand 0, single buffered']
    #allocation3 [shape = 's32[1]{0}', space=sflag, size = 0x4, scoped, tag = 'scoped memory for linear_regression_forward.1']
    %8 = vsyncpa [#allocation3], 0
    // Predicated region
    $region2: #{linear_regression_forward.1} parent=1 // pred_check
      _
    $region3: #{linear_regression_forward.1} parent=1 // pred_check_branch
      %10 = sbr.rel (0) target = $region5
    $region4: #{linear_regression_forward.1} parent=1 // pred_region
      _
    $region5: #{linear_regression_forward.1} parent=1 // pred_fallthru
      _
    // Predicated region
    $region6: #{linear_regression_forward.1} parent=1 // pred_check
      _
    $region7: #{linear_regression_forward.1} parent=1 // pred_check_branch
      %12 = sbr.rel (0) target = $region9
    $region8: #{linear_regression_forward.1} parent=1 // pred_region
      _
    $region9: #{linear_regression_forward.1} parent=1 // pred_fallthru
      _
    // Predicated region
    $region10: #{linear_regression_forward.1} parent=1 // pred_check
      _
    $region11: #{linear_regression_forward.1} parent=1 // pred_check_branch
      %14 = sbr.rel (0) target = $region13
    $region12: #{linear_regression_forward.1} parent=1 // pred_region
      _
    $region13: #{linear_regression_forward.1} parent=1 // pred_fallthru
      _
    %v15 = vld [vmem:[%s0] sm:$0xff]
    %v16 = vld [vmem:[%s1] sm:$0xff]
    %v17 = vld [vmem:[%s1 + $0x8] sm:$0xff]
    %v18 = vld [vmem:[%s1 + $0x10] sm:$0xff]
    %v19 = vld [vmem:[%s1 + $0x18] sm:$0xff]
    %v20 = vld [vmem:[%s1 + $0x20] sm:$0xff]
    %v21 = vld [vmem:[%s1 + $0x28] sm:$0xff]
    %v22 = vld [vmem:[%s1 + $0x30] sm:$0xff]
    %v23 = vld [vmem:[%s1 + $0x38] sm:$0xff]
    %v24 = vld [vmem:[%s1 + $0x40] sm:$0xff]
    %v25 = vld [vmem:[%s1 + $0x48] sm:$0xff]
    %v26 = vld [vmem:[%s1 + $0x50] sm:$0xff]
    %v27 = vld [vmem:[%s1 + $0x58] sm:$0xff]
    %v28 = vld [vmem:[%s1 + $0x60] sm:$0xff]
    %v29 = vld [vmem:[%s1 + $0x68] sm:$0xff]
    %v30 = vld [vmem:[%s1 + $0x70] sm:$0xff]
    %v31 = vld [vmem:[%s1 + $0x78] sm:$0xff]
    %v32 = vld [vmem:[%s2] sm:$0x1]
    %v34 = vlaneseq
    %v35 = vshrl.u32 %v34, 7
    %v36 = vsub.s32 0, %v35
    %v37 = vrot.slane %v32, %v36
    %39 = vmatprep.subr.mxu0 0.0
    %40 = vmatpush1.xpose.msra.mxu0 %v31
    %41 = vmatprep.subr.mxu0 0.0
    %42 = vmatpush1.xpose.msra.mxu0 %v30
    %43 = vmatprep.subr.mxu0 0.0
    %44 = vmatpush1.xpose.msra.mxu0 %v29
    %45 = vmatprep.subr.mxu0 0.0
    %46 = vmatpush1.xpose.msra.mxu0 %v28
    %47 = vmatprep.subr.mxu0 0.0
    %48 = vmatpush1.xpose.msra.mxu0 %v27
    %49 = vmatprep.subr.mxu0 0.0
    %50 = vmatpush1.xpose.msra.mxu0 %v26
    %51 = vmatprep.subr.mxu0 0.0
    %52 = vmatpush1.xpose.msra.mxu0 %v25
    %53 = vmatprep.subr.mxu0 0.0
    %54 = vmatpush1.xpose.msra.mxu0 %v24
    %55 = vmatprep.subr.mxu0 0.0
    %56 = vmatpush1.xpose.msra.mxu0 %v23
    %57 = vmatprep.subr.mxu0 0.0
    %58 = vmatpush1.xpose.msra.mxu0 %v22
    %59 = vmatprep.subr.mxu0 0.0
    %60 = vmatpush1.xpose.msra.mxu0 %v21
    %61 = vmatprep.subr.mxu0 0.0
    %62 = vmatpush1.xpose.msra.mxu0 %v20
    %63 = vmatprep.subr.mxu0 0.0
    %64 = vmatpush1.xpose.msra.mxu0 %v19
    %65 = vmatprep.subr.mxu0 0.0
    %66 = vmatpush1.xpose.msra.mxu0 %v18
    %67 = vmatprep.subr.mxu0 0.0
    %68 = vmatpush1.xpose.msra.mxu0 %v17
    %69 = vmatprep.subr.mxu0 0.0
    %70 = vmatpush1.xpose.msra.mxu0 %v16
    %71 = vmatprep.subr.mxu0 0.0
    %72 = vmatpush2.xpose.msra.mxu0 0.0
    %73 = vmatprep.subr.mxu0 0.0
    %74 = vmatpush2.xpose.msra.mxu0 0.0
    %75 = vmatprep.subr.mxu0 0.0
    %76 = vmatpush2.xpose.msra.mxu0 0.0
    %77 = vmatprep.subr.mxu0 0.0
    %78 = vmatpush2.xpose.msra.mxu0 0.0
    %79 = vmatprep.subr.mxu0 0.0
    %80 = vmatpush2.xpose.msra.mxu0 0.0
    %81 = vmatprep.subr.mxu0 0.0
    %82 = vmatpush2.xpose.msra.mxu0 0.0
    %83 = vmatprep.subr.mxu0 0.0
    %84 = vmatpush2.xpose.msra.mxu0 0.0
    %85 = vmatprep.subr.mxu0 0.0
    %86 = vmatpush2.xpose.msra.mxu0 0.0
    %87 = vmatprep.subr.mxu0 0.0
    %88 = vmatpush2.xpose.msra.mxu0 0.0
    %89 = vmatprep.subr.mxu0 0.0
    %90 = vmatpush2.xpose.msra.mxu0 0.0
    %91 = vmatprep.subr.mxu0 0.0
    %92 = vmatpush2.xpose.msra.mxu0 0.0
    %93 = vmatprep.subr.mxu0 0.0
    %94 = vmatpush2.xpose.msra.mxu0 0.0
    %95 = vmatprep.subr.mxu0 0.0
    %96 = vmatpush2.xpose.msra.mxu0 0.0
    %97 = vmatprep.subr.mxu0 0.0
    %98 = vmatpush2.xpose.msra.mxu0 0.0
    %99 = vmatprep.subr.mxu0 0.0
    %100 = vmatpush2.xpose.msra.mxu0 0.0
    %101 = vmatprep.subr.mxu0 0.0
    %102 = vmatpush2.xpose.msra.mxu0 0.0
    %103 = vmatprep.mubr.f32.mxu0 0.0
    %104 = vmatmul.mubr.f32.gmra.mxu0 %v15
    %v105 = vpop.f32.mrf.mxu0
    %v106 = vadd.f32 %v37, %v105
    %v107 = vpop.f32.mrf.mxu0
    %108 = vdwg.mxu0
    %109 = vst [vmem:[#allocation2] sm:$0xff] %v106
    // Predicated region
    $region14: #{linear_regression_forward.1} parent=1 // pred_check
      _
    $region15: #{linear_regression_forward.1} parent=1 // pred_check_branch
      %111 = sbr.rel (0) target = $region17
    $region16: #{linear_regression_forward.1} parent=1 // pred_region
      %s113 = ssub.s32 128, 128
      %114 = vsyncadd [#allocation3], %s113
      %s116 = sshll.u32 [#allocation2], 4
      %s117 = int_to_ptr.vmem [resolvable:$true] %s116
      %119 = dma.vmem_to_hbm [thread:$0]  %s117, 128, %s3, [#allocation3]
    $region17: #{linear_regression_forward.1} parent=1 // pred_fallthru
      _
    // Predicated region
    $region18: #{linear_regression_forward.1} parent=1 // pred_check
      _
    $region19: #{linear_regression_forward.1} parent=1 // pred_check_branch
      %121 = sbr.rel (0) target = $region21
    $region20: #{linear_regression_forward.1} parent=1 // pred_region
      %122 = dma.done [#allocation3], 128
    $region21: #{linear_regression_forward.1} parent=1 // pred_fallthru
      _
    %123 = vsyncpa [#allocation3], 1

</llo_original>
